<compile_context>
chip_gen: v6e
topology: v6e:2x2x1
jax: 0.10.0
libtpu: 0.0.40
codegen_flags: <defaults>
</compile_context>

<pallas_src>
import functools

import jax
import jax.numpy as jnp
from jax.experimental import pallas as pl
from jax.experimental.pallas import tpu as pltpu

_LANE_CANDIDATES = (2048, 1024, 512, 256, 128)  # lane-dense widths (multiples of 128)
_MAX_DMA_CHUNKS = 8                             # a few large chunks, started then waited
_MIN_CHUNK_BYTES = 1 << 20                      # don't bother splitting below ~1 MiB


def _pick_chunks(rows, lane, itemsize):
    """Largest chunk count (exact divisor of rows) whose chunks stay >= ~1 MiB."""
    for c in range(_MAX_DMA_CHUNKS, 0, -1):
        if rows % c == 0 and (rows // c) * lane * itemsize >= _MIN_CHUNK_BYTES:
            return c
    return 1


def _dma_copy_kernel(x_hbm, o_hbm, sem, *, n_chunks, chunk_rows):
    # Direct HBM->HBM copy: issue all chunk DMAs, then wait on all of them.
    copies = []
    for c in range(n_chunks):
        start = c * chunk_rows  # static Python int -> aligned, unmasked DMA
        cp = pltpu.make_async_copy(
            x_hbm.at[pl.ds(start, chunk_rows), :],
            o_hbm.at[pl.ds(start, chunk_rows), :],
            sem.at[c],
        )
        cp.start()
        copies.append(cp)
    for cp in copies:
        cp.wait()


def pallas_passthru_network(x, *, donated=False):
    """Demo `network`: identity over the batch.

    donated=True  -> the caller donated x's buffer; passthrough is free, return x as-is.
    donated=False -> materialize a distinct output buffer via direct HBM->HBM DMA.
    """
    if donated:
        # Highest-value optimization: an aliased identity copy is 2x total-size of pure
        # HBM waste.  With donation the passthrough costs nothing.
        return x

    orig_shape = x.shape
    total = x.size
    itemsize = jnp.dtype(x.dtype).itemsize

    lane = next((l for l in _LANE_CANDIDATES if total % l == 0), None)
    if lane is None:
        # TODO(synk): element count not a multiple of 128; fall back to XLA identity.
        return x

    rows = total // lane
    x2 = x.reshape(rows, lane)

    n_chunks = _pick_chunks(rows, lane, itemsize)
    chunk_rows = rows // n_chunks

    kernel = functools.partial(
        _dma_copy_kernel, n_chunks=n_chunks, chunk_rows=chunk_rows
    )

    out2 = pl.pallas_call(
        kernel,
        out_shape=jax.ShapeDtypeStruct(x2.shape, x2.dtype),
        in_specs=[pl.BlockSpec(memory_space=pl.ANY)],
        out_specs=pl.BlockSpec(memory_space=pl.ANY),
        scratch_shapes=[pltpu.SemaphoreType.DMA((n_chunks,))],
    )(x2)
    return out2.reshape(orig_shape)


class PassthruGenerator:
    """JAX equivalent of the PyTorch PassthruGenerator: forwards to `network`."""

    def __init__(self, network):
        self.network = network

    def __call__(self, epe_batch):
        return self.network(epe_batch)


if __name__ == "__main__":
    key = jax.random.PRNGKey(0)
    # Small NCHW batch consistent with the EPE image-generator use case.
    x = jax.random.normal(key, (2, 4, 16, 16), dtype=jnp.float32)

    generator = PassthruGenerator(pallas_passthru_network)
    y = generator(x)
    y = jax.block_until_ready(y)

    # PassthruGenerator(network=identity) must return the batch unchanged.
    assert y.shape == x.shape and y.dtype == x.dtype
    assert bool(jnp.allclose(y, x))

    # Donated fast path must also be exact.
    y_donated = jax.block_until_ready(pallas_passthru_network(x, donated=True))
    assert bool(jnp.allclose(y_donated, x))

    print("KERNEL_OK")
</pallas_src>

<mosaic_0001>
module attributes {stable_mosaic.version = 11 : i64} {
  func.func @_dma_copy_kernel(%arg0: memref<1x2048xf32, #tpu.memory_space<any>>, %arg1: memref<1x2048xf32, #tpu.memory_space<any>>, %arg2: memref<1x!tpu.dma_semaphore, #tpu.memory_space<semaphore_mem>>) attributes {dimension_semantics = [], scalar_prefetch = 0 : i64, scratch_operands = 1 : i64, tpu.core_type = #tpu.core_type<tc>} {
    %c0_i32 = arith.constant 0 : i32
    %c0_i32_0 = arith.constant 0 : i32
    %c0_i32_1 = arith.constant 0 : i32
    %0 = tpu.memref_slice %arg0[%c0_i32_0, %c0_i32_1] : memref<1x2048xf32, #tpu.memory_space<any>> -> memref<1x2048xf32, #tpu.memory_space<any>>
    %c0_i32_2 = arith.constant 0 : i32
    %c0_i32_3 = arith.constant 0 : i32
    %1 = tpu.memref_slice %arg1[%c0_i32_2, %c0_i32_3] : memref<1x2048xf32, #tpu.memory_space<any>> -> memref<1x2048xf32, #tpu.memory_space<any>>
    %2 = tpu.memref_slice %arg2[%c0_i32] : memref<1x!tpu.dma_semaphore, #tpu.memory_space<semaphore_mem>> -> memref<1x!tpu.dma_semaphore, #tpu.memory_space<semaphore_mem>>
    %3 = tpu.memref_squeeze %2 : memref<1x!tpu.dma_semaphore, #tpu.memory_space<semaphore_mem>> -> memref<!tpu.dma_semaphore, #tpu.memory_space<semaphore_mem>>
    tpu.enqueue_dma source(%0 : memref<1x2048xf32, #tpu.memory_space<any>>) target(%1 : memref<1x2048xf32, #tpu.memory_space<any>>) target_semaphore(%3 : memref<!tpu.dma_semaphore, #tpu.memory_space<semaphore_mem>>)
    %c0_i32_4 = arith.constant 0 : i32
    %c0_i32_5 = arith.constant 0 : i32
    %c0_i32_6 = arith.constant 0 : i32
    %4 = tpu.memref_slice %arg0[%c0_i32_5, %c0_i32_6] : memref<1x2048xf32, #tpu.memory_space<any>> -> memref<1x2048xf32, #tpu.memory_space<any>>
    %c0_i32_7 = arith.constant 0 : i32
    %c0_i32_8 = arith.constant 0 : i32
    %5 = tpu.memref_slice %arg1[%c0_i32_7, %c0_i32_8] : memref<1x2048xf32, #tpu.memory_space<any>> -> memref<1x2048xf32, #tpu.memory_space<any>>
    %6 = tpu.memref_slice %arg2[%c0_i32_4] : memref<1x!tpu.dma_semaphore, #tpu.memory_space<semaphore_mem>> -> memref<1x!tpu.dma_semaphore, #tpu.memory_space<semaphore_mem>>
    %7 = tpu.memref_squeeze %6 : memref<1x!tpu.dma_semaphore, #tpu.memory_space<semaphore_mem>> -> memref<!tpu.dma_semaphore, #tpu.memory_space<semaphore_mem>>
    tpu.wait_dma2 semaphore(%7 : memref<!tpu.dma_semaphore, #tpu.memory_space<semaphore_mem>>) src(%4 : memref<1x2048xf32, #tpu.memory_space<any>>) dst(%5 : memref<1x2048xf32, #tpu.memory_space<any>>)
    return
  }
}

</mosaic_0001>

<llo_original>
// kernel: tpu_custom_call.1
$region0: #{tpu_custom_call.1}
  #allocation0 [shape = 'u32[]', space=smem, size = 0x4, offset = 0x4, fixed_abs, tag = 'smem constant byte address 0x4 - core index']
  #allocation1 [shape = 'u32[144,128]{1,0:T(1,128)}', space=vmem, size = 0x12000, scoped, tag = 'internal scratch']
  #allocation2 [shape = 's32[1]{0}', space=sflag, size = 0x4, scoped, tag = 'scratch operand']
  #allocation3 [shape = 's32[]', space=sflag, size = 0x4, offset = 0, fixed_abs, tag = 'sflag constant byte address 0x0 - dummy sync flag']
  #allocation4 [shape = 'u32[0]{0}', space=smem, size = 0, offset = 0, fixed_abs, tag = 'smem constant byte address 0x0 - null']
  %s0 = inlined_call_operand.hbm [shape: f32[1,2048], index: 0, kind: input, shape index: {}]
  %s1 = inlined_call_operand.hbm [shape: f32[1,2048], index: 1, kind: output, shape index: {}]
  %s2 = sld [smem:[#allocation0]]
  $region2: #{tpu_custom_call.1} parent=0
    _
  %s4 = ssub.s32 1, %s2
  %s5 = scalar_select 0, %s4, %s2
  %s7 = sshll.u32 1, 14
  %s8 = sxor.u32 4294967295, %s7
  %12 = dma.general %s0, 256, %s1, [#allocation2], 131072, [#allocation4], 0, 0
  %s13 = smul.u32 1, 16
  %s14 = sshll.u32 %s13, 4
  %15 = dma.done [#allocation2], %s14
  %16 = vsyncmov [#allocation2]
  %s17 = vpop.sfrf %16
  %p18 = scmp.eq.s32.totalorder %s17, 0
  %p19 = pneg %p18
  %21 = shalt.err (%p19)

</llo_original>
